<compile_context>
chip_gen: v6e
topology: v6e:2x2x1
jax: 0.10.0
libtpu: 0.0.40
codegen_flags: <defaults>
</compile_context>

<pallas_src>
import jax
import jax.numpy as jnp
from jax import lax
from jax.experimental import pallas as pl
from jax.experimental.pallas import tpu as pltpu

K = 5  # Conv2d kernel_size


def _conv5x5_kernel(w_ref, b_ref, x_ref, o_ref):
    """One block of NB lane-packed image groups per grid step.

    w_ref: SMEM (25,)        flattened 5x5 conv weights (f32)
    b_ref: SMEM (1,)         conv bias (f32)
    x_ref: VMEM (NB, H, GW)  G images packed side by side along lanes
    o_ref: VMEM (NB, OH, GW) packed outputs; the last K-1 columns of each
                             W-wide image slot are a garbage halo that the
                             wrapper strips.
    """
    oh = o_ref.shape[1]
    gw = o_ref.shape[2]

    # Hoist the 25 scalar weight reads out of the tap loops.
    wt = [w_ref[i] for i in range(K * K)]

    x = x_ref[...].astype(jnp.float32)               # single full-block load
    acc = jnp.zeros(o_ref.shape, jnp.float32)
    for di in range(K):
        band = x[:, di:di + oh, :]                   # row band for tap row di
        for dj in range(K):
            # Column shift on the XLU (otherwise idle).  Wrapped-around columns
            # only land at positions >= OW inside each image slot, which the
            # wrapper discards, so no mask is required.
            shifted = band if dj == 0 else pltpu.roll(band, shift=gw - dj, axis=2)
            acc = acc + wt[di * K + dj] * shifted
    o_ref[...] = (acc + b_ref[0]).astype(o_ref.dtype)


def conv2d_c1_k5(x_nchw, weight, bias):
    """x_nchw: (N, 1, H, W); weight: (1, 1, 5, 5); bias: (1,) -> (N, 1, OH, OW)."""
    n, c, h, w = x_nchw.shape
    assert c == 1, "Conv2d(1, 1, 5) expects a single input channel"
    assert h >= K and w >= K
    oh, ow = h - (K - 1), w - (K - 1)

    x = x_nchw[:, 0, :, :]                                   # (N, H, W)
    w_flat = weight.reshape(K * K).astype(jnp.float32)       # (25,)
    b1 = bias.astype(jnp.float32)                            # (1,)

    # ---- lane packing: G images side by side along the lane axis ----------
    g = 1 if w >= 128 else max(1, min(n, 128 // w))
    gw = g * w

    # ---- groups-per-block sized so a block (double-buffered in/out plus the
    #      f32 accumulator / temporaries) stays well inside scoped VMEM -------
    itemsize = jnp.dtype(x.dtype).itemsize
    per_group = 2 * (h + oh) * gw * itemsize + 4 * oh * gw * 4
    groups_needed = pl.cdiv(n, g)
    nb = max(1, min(groups_needed, (8 * 1024 * 1024) // max(per_group, 1)))
    if groups_needed >= 2:           # >=2 blocks so v7x's two TCs both get work
        nb = min(nb, pl.cdiv(groups_needed, 2))
    blocks = pl.cdiv(groups_needed, nb)
    ng = blocks * nb
    n_pad = ng * g

    if n_pad != n:                   # pad batch with zero images
        x = jnp.concatenate([x, jnp.zeros((n_pad - n, h, w), x.dtype)], axis=0)
    xp = (x.reshape(ng, g, h, w)
           .transpose(0, 2, 1, 3)
           .reshape(ng, h, gw))                              # (NG, H, G*W)

    out_p = pl.pallas_call(
        _conv5x5_kernel,
        out_shape=jax.ShapeDtypeStruct((ng, oh, gw), x.dtype),
        grid=(blocks,),
        in_specs=[
            pl.BlockSpec(memory_space=pltpu.SMEM),           # weights (25,)
            pl.BlockSpec(memory_space=pltpu.SMEM),           # bias (1,)
            pl.BlockSpec((nb, h, gw), lambda b: (b, 0, 0)),  # packed inputs
        ],
        out_specs=pl.BlockSpec((nb, oh, gw), lambda b: (b, 0, 0)),
        compiler_params=pltpu.CompilerParams(
            dimension_semantics=("parallel",)),
    )(w_flat, b1, xp)                                        # (NG, OH, G*W)

    # ---- unpack: strip per-image column halo and batch padding -------------
    out = (out_p.reshape(ng, oh, g, w)
                .transpose(0, 2, 1, 3)
                .reshape(n_pad, oh, w)[:n, :, :ow])
    return out[:, None, :, :]                                # (N, 1, OH, OW)


if __name__ == "__main__":
    key = jax.random.PRNGKey(0)
    k_x, k_w, k_b = jax.random.split(key, 3)

    # Deterministic parameters matching Conv2d(1, 1, 5) shapes.
    weight = jax.random.normal(k_w, (1, 1, K, K), dtype=jnp.float32) * 0.2
    bias = jax.random.normal(k_b, (1,), dtype=jnp.float32) * 0.1

    # Small NCHW input consistent with the module (C must be 1).
    x = jax.random.normal(k_x, (2, 1, 16, 16), dtype=jnp.float32)

    out = conv2d_c1_k5(x, weight, bias)
    out = jax.block_until_ready(out)

    # Reference check: same semantics as torch Conv2d (cross-corr, VALID).
    ref = lax.conv_general_dilated(
        x, weight, window_strides=(1, 1), padding="VALID",
        dimension_numbers=("NCHW", "OIHW", "NCHW")) + bias[None, :, None, None]
    assert out.shape == (2, 1, 12, 12), out.shape
    max_err = float(jnp.max(jnp.abs(out - ref)))
    assert jnp.allclose(out, ref, atol=1e-5, rtol=1e-5), max_err

    print("KERNEL_OK")
</pallas_src>

<mosaic_0001>
module attributes {stable_mosaic.version = 11 : i64} {
  func.func @_conv5x5_kernel(%arg0: i32, %arg1: memref<25xf32, #tpu.memory_space<smem>>, %arg2: memref<1xf32, #tpu.memory_space<smem>>, %arg3: memref<1x16x32xf32, #tpu.memory_space<vmem>>, %arg4: memref<1x12x32xf32, #tpu.memory_space<vmem>>) attributes {dimension_semantics = [#tpu.dimension_semantics<parallel>], iteration_bounds = array<i64: 1>, scalar_prefetch = 0 : i64, scratch_operands = 0 : i64, tpu.core_type = #tpu.core_type<tc>, window_params = [{transform_indices = @transform_0, window_bounds = array<i64: 25>}, {transform_indices = @transform_1, window_bounds = array<i64: 1>}, {transform_indices = @transform_2, window_bounds = array<i64: 1, 16, 32>}, {transform_indices = @transform_3, window_bounds = array<i64: 1, 12, 32>}]} {
    %c0 = arith.constant 0 : index
    %0 = memref.load %arg1[%c0] : memref<25xf32, #tpu.memory_space<smem>>
    %c1 = arith.constant 1 : index
    %1 = memref.load %arg1[%c1] : memref<25xf32, #tpu.memory_space<smem>>
    %c2 = arith.constant 2 : index
    %2 = memref.load %arg1[%c2] : memref<25xf32, #tpu.memory_space<smem>>
    %c3 = arith.constant 3 : index
    %3 = memref.load %arg1[%c3] : memref<25xf32, #tpu.memory_space<smem>>
    %c4 = arith.constant 4 : index
    %4 = memref.load %arg1[%c4] : memref<25xf32, #tpu.memory_space<smem>>
    %c5 = arith.constant 5 : index
    %5 = memref.load %arg1[%c5] : memref<25xf32, #tpu.memory_space<smem>>
    %c6 = arith.constant 6 : index
    %6 = memref.load %arg1[%c6] : memref<25xf32, #tpu.memory_space<smem>>
    %c7 = arith.constant 7 : index
    %7 = memref.load %arg1[%c7] : memref<25xf32, #tpu.memory_space<smem>>
    %c8 = arith.constant 8 : index
    %8 = memref.load %arg1[%c8] : memref<25xf32, #tpu.memory_space<smem>>
    %c9 = arith.constant 9 : index
    %9 = memref.load %arg1[%c9] : memref<25xf32, #tpu.memory_space<smem>>
    %c10 = arith.constant 10 : index
    %10 = memref.load %arg1[%c10] : memref<25xf32, #tpu.memory_space<smem>>
    %c11 = arith.constant 11 : index
    %11 = memref.load %arg1[%c11] : memref<25xf32, #tpu.memory_space<smem>>
    %c12 = arith.constant 12 : index
    %12 = memref.load %arg1[%c12] : memref<25xf32, #tpu.memory_space<smem>>
    %c13 = arith.constant 13 : index
    %13 = memref.load %arg1[%c13] : memref<25xf32, #tpu.memory_space<smem>>
    %c14 = arith.constant 14 : index
    %14 = memref.load %arg1[%c14] : memref<25xf32, #tpu.memory_space<smem>>
    %c15 = arith.constant 15 : index
    %15 = memref.load %arg1[%c15] : memref<25xf32, #tpu.memory_space<smem>>
    %c16 = arith.constant 16 : index
    %16 = memref.load %arg1[%c16] : memref<25xf32, #tpu.memory_space<smem>>
    %c17 = arith.constant 17 : index
    %17 = memref.load %arg1[%c17] : memref<25xf32, #tpu.memory_space<smem>>
    %c18 = arith.constant 18 : index
    %18 = memref.load %arg1[%c18] : memref<25xf32, #tpu.memory_space<smem>>
    %c19 = arith.constant 19 : index
    %19 = memref.load %arg1[%c19] : memref<25xf32, #tpu.memory_space<smem>>
    %c20 = arith.constant 20 : index
    %20 = memref.load %arg1[%c20] : memref<25xf32, #tpu.memory_space<smem>>
    %c21 = arith.constant 21 : index
    %21 = memref.load %arg1[%c21] : memref<25xf32, #tpu.memory_space<smem>>
    %c22 = arith.constant 22 : index
    %22 = memref.load %arg1[%c22] : memref<25xf32, #tpu.memory_space<smem>>
    %c23 = arith.constant 23 : index
    %23 = memref.load %arg1[%c23] : memref<25xf32, #tpu.memory_space<smem>>
    %c24 = arith.constant 24 : index
    %24 = memref.load %arg1[%c24] : memref<25xf32, #tpu.memory_space<smem>>
    %c0_0 = arith.constant 0 : index
    %c0_1 = arith.constant 0 : index
    %c0_2 = arith.constant 0 : index
    %25 = vector.load %arg3[%c0_0, %c0_1, %c0_2] : memref<1x16x32xf32, #tpu.memory_space<vmem>>, vector<1x16x32xf32>
    %cst = arith.constant 0.000000e+00 : f32
    %26 = vector.broadcast %cst : f32 to vector<1x12x32xf32>
    %27 = vector.extract_strided_slice %25 {offsets = [0, 0, 0], sizes = [1, 12, 32], strides = [1, 1, 1]} : vector<1x16x32xf32> to vector<1x12x32xf32>
    %28 = vector.broadcast %0 : f32 to vector<1x12x32xf32>
    %29 = arith.mulf %28, %27 : vector<1x12x32xf32>
    %30 = arith.addf %26, %29 : vector<1x12x32xf32>
    %c31_i32 = arith.constant 31 : i32
    %31 = tpu.dynamic_rotate %27 by %c31_i32 dim 2 : vector<1x12x32xf32>, i32 -> vector<1x12x32xf32>
    %32 = vector.broadcast %1 : f32 to vector<1x12x32xf32>
    %33 = arith.mulf %32, %31 : vector<1x12x32xf32>
    %34 = arith.addf %30, %33 : vector<1x12x32xf32>
    %c30_i32 = arith.constant 30 : i32
    %35 = tpu.dynamic_rotate %27 by %c30_i32 dim 2 : vector<1x12x32xf32>, i32 -> vector<1x12x32xf32>
    %36 = vector.broadcast %2 : f32 to vector<1x12x32xf32>
    %37 = arith.mulf %36, %35 : vector<1x12x32xf32>
    %38 = arith.addf %34, %37 : vector<1x12x32xf32>
    %c29_i32 = arith.constant 29 : i32
    %39 = tpu.dynamic_rotate %27 by %c29_i32 dim 2 : vector<1x12x32xf32>, i32 -> vector<1x12x32xf32>
    %40 = vector.broadcast %3 : f32 to vector<1x12x32xf32>
    %41 = arith.mulf %40, %39 : vector<1x12x32xf32>
    %42 = arith.addf %38, %41 : vector<1x12x32xf32>
    %c28_i32 = arith.constant 28 : i32
    %43 = tpu.dynamic_rotate %27 by %c28_i32 dim 2 : vector<1x12x32xf32>, i32 -> vector<1x12x32xf32>
    %44 = vector.broadcast %4 : f32 to vector<1x12x32xf32>
    %45 = arith.mulf %44, %43 : vector<1x12x32xf32>
    %46 = arith.addf %42, %45 : vector<1x12x32xf32>
    %47 = vector.extract_strided_slice %25 {offsets = [0, 1, 0], sizes = [1, 12, 32], strides = [1, 1, 1]} : vector<1x16x32xf32> to vector<1x12x32xf32>
    %48 = vector.broadcast %5 : f32 to vector<1x12x32xf32>
    %49 = arith.mulf %48, %47 : vector<1x12x32xf32>
    %50 = arith.addf %46, %49 : vector<1x12x32xf32>
    %c31_i32_3 = arith.constant 31 : i32
    %51 = tpu.dynamic_rotate %47 by %c31_i32_3 dim 2 : vector<1x12x32xf32>, i32 -> vector<1x12x32xf32>
    %52 = vector.broadcast %6 : f32 to vector<1x12x32xf32>
    %53 = arith.mulf %52, %51 : vector<1x12x32xf32>
    %54 = arith.addf %50, %53 : vector<1x12x32xf32>
    %c30_i32_4 = arith.constant 30 : i32
    %55 = tpu.dynamic_rotate %47 by %c30_i32_4 dim 2 : vector<1x12x32xf32>, i32 -> vector<1x12x32xf32>
    %56 = vector.broadcast %7 : f32 to vector<1x12x32xf32>
    %57 = arith.mulf %56, %55 : vector<1x12x32xf32>
    %58 = arith.addf %54, %57 : vector<1x12x32xf32>
    %c29_i32_5 = arith.constant 29 : i32
    %59 = tpu.dynamic_rotate %47 by %c29_i32_5 dim 2 : vector<1x12x32xf32>, i32 -> vector<1x12x32xf32>
    %60 = vector.broadcast %8 : f32 to vector<1x12x32xf32>
    %61 = arith.mulf %60, %59 : vector<1x12x32xf32>
    %62 = arith.addf %58, %61 : vector<1x12x32xf32>
    %c28_i32_6 = arith.constant 28 : i32
    %63 = tpu.dynamic_rotate %47 by %c28_i32_6 dim 2 : vector<1x12x32xf32>, i32 -> vector<1x12x32xf32>
    %64 = vector.broadcast %9 : f32 to vector<1x12x32xf32>
    %65 = arith.mulf %64, %63 : vector<1x12x32xf32>
    %66 = arith.addf %62, %65 : vector<1x12x32xf32>
    %67 = vector.extract_strided_slice %25 {offsets = [0, 2, 0], sizes = [1, 12, 32], strides = [1, 1, 1]} : vector<1x16x32xf32> to vector<1x12x32xf32>
    %68 = vector.broadcast %10 : f32 to vector<1x12x32xf32>
    %69 = arith.mulf %68, %67 : vector<1x12x32xf32>
    %70 = arith.addf %66, %69 : vector<1x12x32xf32>
    %c31_i32_7 = arith.constant 31 : i32
    %71 = tpu.dynamic_rotate %67 by %c31_i32_7 dim 2 : vector<1x12x32xf32>, i32 -> vector<1x12x32xf32>
    %72 = vector.broadcast %11 : f32 to vector<1x12x32xf32>
    %73 = arith.mulf %72, %71 : vector<1x12x32xf32>
    %74 = arith.addf %70, %73 : vector<1x12x32xf32>
    %c30_i32_8 = arith.constant 30 : i32
    %75 = tpu.dynamic_rotate %67 by %c30_i32_8 dim 2 : vector<1x12x32xf32>, i32 -> vector<1x12x32xf32>
    %76 = vector.broadcast %12 : f32 to vector<1x12x32xf32>
    %77 = arith.mulf %76, %75 : vector<1x12x32xf32>
    %78 = arith.addf %74, %77 : vector<1x12x32xf32>
    %c29_i32_9 = arith.constant 29 : i32
    %79 = tpu.dynamic_rotate %67 by %c29_i32_9 dim 2 : vector<1x12x32xf32>, i32 -> vector<1x12x32xf32>
    %80 = vector.broadcast %13 : f32 to vector<1x12x32xf32>
    %81 = arith.mulf %80, %79 : vector<1x12x32xf32>
    %82 = arith.addf %78, %81 : vector<1x12x32xf32>
    %c28_i32_10 = arith.constant 28 : i32
    %83 = tpu.dynamic_rotate %67 by %c28_i32_10 dim 2 : vector<1x12x32xf32>, i32 -> vector<1x12x32xf32>
    %84 = vector.broadcast %14 : f32 to vector<1x12x32xf32>
    %85 = arith.mulf %84, %83 : vector<1x12x32xf32>
    %86 = arith.addf %82, %85 : vector<1x12x32xf32>
    %87 = vector.extract_strided_slice %25 {offsets = [0, 3, 0], sizes = [1, 12, 32], strides = [1, 1, 1]} : vector<1x16x32xf32> to vector<1x12x32xf32>
    %88 = vector.broadcast %15 : f32 to vector<1x12x32xf32>
    %89 = arith.mulf %88, %87 : vector<1x12x32xf32>
    %90 = arith.addf %86, %89 : vector<1x12x32xf32>
    %c31_i32_11 = arith.constant 31 : i32
    %91 = tpu.dynamic_rotate %87 by %c31_i32_11 dim 2 : vector<1x12x32xf32>, i32 -> vector<1x12x32xf32>
    %92 = vector.broadcast %16 : f32 to vector<1x12x32xf32>
    %93 = arith.mulf %92, %91 : vector<1x12x32xf32>
    %94 = arith.addf %90, %93 : vector<1x12x32xf32>
    %c30_i32_12 = arith.constant 30 : i32
    %95 = tpu.dynamic_rotate %87 by %c30_i32_12 dim 2 : vector<1x12x32xf32>, i32 -> vector<1x12x32xf32>
    %96 = vector.broadcast %17 : f32 to vector<1x12x32xf32>
    %97 = arith.mulf %96, %95 : vector<1x12x32xf32>
    %98 = arith.addf %94, %97 : vector<1x12x32xf32>
    %c29_i32_13 = arith.constant 29 : i32
    %99 = tpu.dynamic_rotate %87 by %c29_i32_13 dim 2 : vector<1x12x32xf32>, i32 -> vector<1x12x32xf32>
    %100 = vector.broadcast %18 : f32 to vector<1x12x32xf32>
    %101 = arith.mulf %100, %99 : vector<1x12x32xf32>
    %102 = arith.addf %98, %101 : vector<1x12x32xf32>
    %c28_i32_14 = arith.constant 28 : i32
    %103 = tpu.dynamic_rotate %87 by %c28_i32_14 dim 2 : vector<1x12x32xf32>, i32 -> vector<1x12x32xf32>
    %104 = vector.broadcast %19 : f32 to vector<1x12x32xf32>
    %105 = arith.mulf %104, %103 : vector<1x12x32xf32>
    %106 = arith.addf %102, %105 : vector<1x12x32xf32>
    %107 = vector.extract_strided_slice %25 {offsets = [0, 4, 0], sizes = [1, 12, 32], strides = [1, 1, 1]} : vector<1x16x32xf32> to vector<1x12x32xf32>
    %108 = vector.broadcast %20 : f32 to vector<1x12x32xf32>
    %109 = arith.mulf %108, %107 : vector<1x12x32xf32>
    %110 = arith.addf %106, %109 : vector<1x12x32xf32>
    %c31_i32_15 = arith.constant 31 : i32
    %111 = tpu.dynamic_rotate %107 by %c31_i32_15 dim 2 : vector<1x12x32xf32>, i32 -> vector<1x12x32xf32>
    %112 = vector.broadcast %21 : f32 to vector<1x12x32xf32>
    %113 = arith.mulf %112, %111 : vector<1x12x32xf32>
    %114 = arith.addf %110, %113 : vector<1x12x32xf32>
    %c30_i32_16 = arith.constant 30 : i32
    %115 = tpu.dynamic_rotate %107 by %c30_i32_16 dim 2 : vector<1x12x32xf32>, i32 -> vector<1x12x32xf32>
    %116 = vector.broadcast %22 : f32 to vector<1x12x32xf32>
    %117 = arith.mulf %116, %115 : vector<1x12x32xf32>
    %118 = arith.addf %114, %117 : vector<1x12x32xf32>
    %c29_i32_17 = arith.constant 29 : i32
    %119 = tpu.dynamic_rotate %107 by %c29_i32_17 dim 2 : vector<1x12x32xf32>, i32 -> vector<1x12x32xf32>
    %120 = vector.broadcast %23 : f32 to vector<1x12x32xf32>
    %121 = arith.mulf %120, %119 : vector<1x12x32xf32>
    %122 = arith.addf %118, %121 : vector<1x12x32xf32>
    %c28_i32_18 = arith.constant 28 : i32
    %123 = tpu.dynamic_rotate %107 by %c28_i32_18 dim 2 : vector<1x12x32xf32>, i32 -> vector<1x12x32xf32>
    %124 = vector.broadcast %24 : f32 to vector<1x12x32xf32>
    %125 = arith.mulf %124, %123 : vector<1x12x32xf32>
    %126 = arith.addf %122, %125 : vector<1x12x32xf32>
    %c0_19 = arith.constant 0 : index
    %127 = memref.load %arg2[%c0_19] : memref<1xf32, #tpu.memory_space<smem>>
    %128 = vector.broadcast %127 : f32 to vector<1x12x32xf32>
    %129 = arith.addf %126, %128 : vector<1x12x32xf32>
    %c0_20 = arith.constant 0 : index
    %c0_21 = arith.constant 0 : index
    %c0_22 = arith.constant 0 : index
    %130 = vector.load %arg4[%c0_20, %c0_21, %c0_22] : memref<1x12x32xf32, #tpu.memory_space<vmem>>, vector<1x12x32xf32>
    tpu.vector_store %arg4[%c0_20, %c0_21, %c0_22], %129 {strides = array<i32>} : memref<1x12x32xf32, #tpu.memory_space<vmem>>, vector<1x12x32xf32>,
    return
  }
  func.func @transform_0(%arg0: i32) -> i32 {
    %c0_i32 = arith.constant 0 : i32
    %c0_i32_0 = arith.constant 0 : i32
    return %c0_i32 : i32
  }
  func.func @transform_1(%arg0: i32) -> i32 {
    %c0_i32 = arith.constant 0 : i32
    %c0_i32_0 = arith.constant 0 : i32
    return %c0_i32 : i32
  }
  func.func @transform_2(%arg0: i32) -> (i32, i32, i32) {
    %c0_i32 = arith.constant 0 : i32
    %c0_i32_0 = arith.constant 0 : i32
    %c0_i32_1 = arith.constant 0 : i32
    return %arg0, %c0_i32, %c0_i32_0 : i32, i32, i32
  }
  func.func @transform_3(%arg0: i32) -> (i32, i32, i32) {
    %c0_i32 = arith.constant 0 : i32
    %c0_i32_0 = arith.constant 0 : i32
    %c0_i32_1 = arith.constant 0 : i32
    return %arg0, %c0_i32, %c0_i32_0 : i32, i32, i32
  }
}

</mosaic_0001>

<llo_original>
// kernel: tpu_custom_call.1
$region0: #{tpu_custom_call.1}
  #allocation0 [shape = 'u32[]', space=smem, size = 0x4, offset = 0x4, fixed_abs, tag = 'smem constant byte address 0x4 - core index']
  #allocation1 [shape = 'u32[144,128]{1,0:T(1,128)}', space=vmem, size = 0x12000, scoped, tag = 'internal scratch']
  #allocation2 [shape = 'f32[1]{0:T(128)S(6)}', space=smem, size = 0x200, scoped, tag = 'scoped memory for tpu_custom_call.1']
  %s0 = inlined_call_operand.vmem [shape: f32[25], index: 0, kind: input, shape index: {}]
  %s1 = inlined_call_operand.<no memory space> [shape: f32[1], index: 1, kind: input, shape index: {}]
  %s2 = inlined_call_operand.hbm [shape: f32[1,16,32], index: 2, kind: input, shape index: {}]
  %s3 = inlined_call_operand.vmem [shape: f32[1,12,32], index: 3, kind: output, shape index: {}]
  %s4 = sld [smem:[#allocation0]]
  $region30: #{tpu_custom_call.1} parent=0
    _
  %s6 = ssub.s32 1, %s4
  %s7 = scalar_select 0, %s6, %s4
  %8 = sst [smem:[#allocation2]] %s1
  $region1: #{tpu_custom_call.1} parent=0
    #allocation3 [shape = 'u8[512]{0}', space=smem, size = 0x200, scoped, tag = 'input window, operand 0, single buffered']
    #allocation4 [shape = 's32[1]{0}', space=sflag, size = 0x4, scoped, tag = 'scoped memory for tpu_custom_call.1']
    #allocation5 [shape = 's32[1]{0}', space=sflag, size = 0x4, scoped, tag = 'scoped memory for tpu_custom_call.1']
    #allocation6 [shape = 'u8[8192]{0}', space=vmem, size = 0x2000, scoped, tag = 'input window, operand 2, single buffered']
    %9 = vsyncpa [#allocation5], 0
    %10 = vsyncpa [#allocation4], 0
    // Predicated region
    $region2: #{tpu_custom_call.1} parent=1 // pred_check
      _
    $region3: #{tpu_custom_call.1} parent=1 // pred_check_branch
      %12 = sbr.rel (0) target = $region5
    $region4: #{tpu_custom_call.1} parent=1 // pred_region
      %s14 = ssub.s32 16, 16
      %15 = vsyncadd [#allocation5], %s14
      %s17 = sshll.u32 %s0, 4
      %s18 = int_to_ptr.vmem [resolvable:$true] %s17
      %20 = dma.vmem_to_smem %s18, 16, [#allocation3], [#allocation5]
    $region5: #{tpu_custom_call.1} parent=1 // pred_fallthru
      _
    // Predicated region
    $region6: #{tpu_custom_call.1} parent=1 // pred_check
      _
    $region7: #{tpu_custom_call.1} parent=1 // pred_check_branch
      %22 = sbr.rel (0) target = $region9
    $region8: #{tpu_custom_call.1} parent=1 // pred_region
      _
    $region9: #{tpu_custom_call.1} parent=1 // pred_fallthru
      _
    // Predicated region
    $region10: #{tpu_custom_call.1} parent=1 // pred_check
      _
    $region11: #{tpu_custom_call.1} parent=1 // pred_check_branch
      %24 = sbr.rel (0) target = $region13
    $region12: #{tpu_custom_call.1} parent=1 // pred_region
      %s26 = ssub.s32 256, 256
      %27 = vsyncadd [#allocation4], %s26
      %s28 = sshll.u32 [#allocation6], 4
      %s29 = int_to_ptr.vmem [resolvable:$true] %s28
      %34 = dma.hbm_to_vmem [thread:$0]  %s2, 256, %s29, [#allocation4], 128, 128, 8
    $region13: #{tpu_custom_call.1} parent=1 // pred_fallthru
      _
    // Predicated region
    $region14: #{tpu_custom_call.1} parent=1 // pred_check
      _
    $region15: #{tpu_custom_call.1} parent=1 // pred_check_branch
      %36 = sbr.rel (0) target = $region17
    $region16: #{tpu_custom_call.1} parent=1 // pred_region
      %37 = dma.done [#allocation5], 16
    $region17: #{tpu_custom_call.1} parent=1 // pred_fallthru
      _
    // Predicated region
    $region18: #{tpu_custom_call.1} parent=1 // pred_check
      _
    $region19: #{tpu_custom_call.1} parent=1 // pred_check_branch
      %39 = sbr.rel (0) target = $region21
    $region20: #{tpu_custom_call.1} parent=1 // pred_region
      %40 = dma.done [#allocation4], 256
    $region21: #{tpu_custom_call.1} parent=1 // pred_fallthru
      _
    %41 = sfence
    %s42 = sld [smem:[#allocation3]]
    %s43 = sld [smem:[#allocation3 + $0x1]]
    %s44 = sld [smem:[#allocation3 + $0x2]]
    %s45 = sld [smem:[#allocation3 + $0x3]]
    %s46 = sld [smem:[#allocation3 + $0x4]]
    %s47 = sld [smem:[#allocation3 + $0x5]]
    %s48 = sld [smem:[#allocation3 + $0x6]]
    %s49 = sld [smem:[#allocation3 + $0x7]]
    %s50 = sld [smem:[#allocation3 + $0x8]]
    %s51 = sld [smem:[#allocation3 + $0x9]]
    %s52 = sld [smem:[#allocation3 + $0xa]]
    %s53 = sld [smem:[#allocation3 + $0xb]]
    %s54 = sld [smem:[#allocation3 + $0xc]]
    %s55 = sld [smem:[#allocation3 + $0xd]]
    %s56 = sld [smem:[#allocation3 + $0xe]]
    %s57 = sld [smem:[#allocation3 + $0xf]]
    %s58 = sld [smem:[#allocation3 + $0x10]]
    %s59 = sld [smem:[#allocation3 + $0x11]]
    %s60 = sld [smem:[#allocation3 + $0x12]]
    %s61 = sld [smem:[#allocation3 + $0x13]]
    %s62 = sld [smem:[#allocation3 + $0x14]]
    %s63 = sld [smem:[#allocation3 + $0x15]]
    %s64 = sld [smem:[#allocation3 + $0x16]]
    %s65 = sld [smem:[#allocation3 + $0x17]]
    %s66 = sld [smem:[#allocation3 + $0x18]]
    %v67 = vld [vmem:[#allocation6] sm:$0xff]
    %v68 = vld [vmem:[#allocation6 + $0x8] sm:$0xff]
    %v69 = vstv %s42
    %v70 = vmul.f32 %v69, %v67
    %v71 = vmul.f32 %v69, %v68
    %v72 = vadd.f32 %v70, 0.0
    %v73 = vadd.f32 %v71, 0.0
    %vm74 = vcmask 1047808
    %75 = vrot.lane.b32.xlu0 %v67, 32
    %v76 = vpop.permute.xlu0 %75
    %v77 = vsel %vm74, %v76, %v67
    %78 = vrot.lane.b32.xlu0 %v68, 32
    %v79 = vpop.permute.xlu0 %78
    %v80 = vsel %vm74, %v79, %v68
    %81 = vrot.lane.b32.xlu0 %v77, 32
    %v82 = vpop.permute.xlu0 %81
    %83 = vrot.lane.b32.xlu0 %v80, 32
    %v84 = vpop.permute.xlu0 %83
    %v85 = vsel %vm74, %v82, %v67
    %v86 = vsel %vm74, %v84, %v68
    %v87 = vstv %s43
    %v88 = vmul.f32 %v87, %v85
    %v89 = vmul.f32 %v87, %v86
    %92 = vrot.lane.b32.xlu0 %v88, 127
    %v93 = vpop.permute.xlu0 %92
    %94 = vrot.lane.b32.xlu0 %v89, 127
    %v95 = vpop.permute.xlu0 %94
    %v98 = vadd.f32 %v72, %v93
    %v99 = vadd.f32 %v73, %v95
    %v100 = vstv %s44
    %v101 = vmul.f32 %v100, %v85
    %v102 = vmul.f32 %v100, %v86
    %105 = vrot.lane.b32.xlu0 %v101, 126
    %v106 = vpop.permute.xlu0 %105
    %107 = vrot.lane.b32.xlu0 %v102, 126
    %v108 = vpop.permute.xlu0 %107
    %v111 = vadd.f32 %v98, %v106
    %v112 = vadd.f32 %v99, %v108
    %v113 = vstv %s45
    %v114 = vmul.f32 %v113, %v85
    %v115 = vmul.f32 %v113, %v86
    %118 = vrot.lane.b32.xlu0 %v114, 125
    %v119 = vpop.permute.xlu0 %118
    %120 = vrot.lane.b32.xlu0 %v115, 125
    %v121 = vpop.permute.xlu0 %120
    %v124 = vadd.f32 %v111, %v119
    %v125 = vadd.f32 %v112, %v121
    %v126 = vstv %s46
    %v127 = vmul.f32 %v126, %v85
    %v128 = vmul.f32 %v126, %v86
    %131 = vrot.lane.b32.xlu0 %v127, 124
    %v132 = vpop.permute.xlu0 %131
    %133 = vrot.lane.b32.xlu0 %v128, 124
    %v134 = vpop.permute.xlu0 %133
    %v137 = vadd.f32 %v124, %v132
    %v138 = vadd.f32 %v125, %v134
    %v139 = vstv %s47
    %v140 = vmul.f32 %v139, %v67
    %v141 = vmul.f32 %v139, %v68
    %vm144 = vcmask 1046528
    %v145 = vrot.slane %v140, 1
    %v146 = vrot.slane %v141, 1
    %v147 = vsel %vm144, %v145, %v146
    %v150 = vadd.f32 %v137, %v147
    %v151 = vadd.f32 %v138, %v146
    %v154 = vrot.slane %v67, 1
    %v155 = vrot.slane %v68, 1
    %v156 = vsel %vm144, %v154, %v155
    %159 = vrot.lane.b32.xlu0 %v156, 32
    %v160 = vpop.permute.xlu0 %159
    %v161 = vsel %vm74, %v160, %v156
    %162 = vrot.lane.b32.xlu0 %v155, 32
    %v163 = vpop.permute.xlu0 %162
    %v164 = vsel %vm74, %v163, %v155
    %165 = vrot.lane.b32.xlu0 %v161, 32
    %v166 = vpop.permute.xlu0 %165
    %167 = vrot.lane.b32.xlu0 %v164, 32
    %v168 = vpop.permute.xlu0 %167
    %v169 = vsel %vm74, %v166, %v156
    %v170 = vsel %vm74, %v168, %v155
    %v171 = vstv %s48
    %v172 = vmul.f32 %v171, %v169
    %v173 = vmul.f32 %v171, %v170
    %176 = vrot.lane.b32.xlu0 %v172, 127
    %v177 = vpop.permute.xlu0 %176
    %178 = vrot.lane.b32.xlu0 %v173, 127
    %v179 = vpop.permute.xlu0 %178
    %v182 = vadd.f32 %v150, %v177
    %v183 = vadd.f32 %v151, %v179
    %v184 = vstv %s49
    %v185 = vmul.f32 %v184, %v169
    %v186 = vmul.f32 %v184, %v170
    %189 = vrot.lane.b32.xlu0 %v185, 126
    %v190 = vpop.permute.xlu0 %189
    %191 = vrot.lane.b32.xlu0 %v186, 126
    %v192 = vpop.permute.xlu0 %191
    %v195 = vadd.f32 %v182, %v190
    %v196 = vadd.f32 %v183, %v192
    %v197 = vstv %s50
    %v198 = vmul.f32 %v197, %v169
    %v199 = vmul.f32 %v197, %v170
    %202 = vrot.lane.b32.xlu0 %v198, 125
    %v203 = vpop.permute.xlu0 %202
    %204 = vrot.lane.b32.xlu0 %v199, 125
    %v205 = vpop.permute.xlu0 %204
    %v208 = vadd.f32 %v195, %v203
    %v209 = vadd.f32 %v196, %v205
    %v210 = vstv %s51
    %v211 = vmul.f32 %v210, %v169
    %v212 = vmul.f32 %v210, %v170
    %215 = vrot.lane.b32.xlu0 %v211, 124
    %v216 = vpop.permute.xlu0 %215
    %217 = vrot.lane.b32.xlu0 %v212, 124
    %v218 = vpop.permute.xlu0 %217
    %v221 = vadd.f32 %v208, %v216
    %v222 = vadd.f32 %v209, %v218
    %v223 = vstv %s52
    %v224 = vmul.f32 %v223, %v67
    %v225 = vmul.f32 %v223, %v68
    %vm228 = vcmask 1045504
    %v229 = vrot.slane %v224, 2
    %v230 = vrot.slane %v225, 2
    %v231 = vsel %vm228, %v229, %v230
    %v234 = vadd.f32 %v221, %v231
    %v235 = vadd.f32 %v222, %v230
    %v236 = vrot.slane %v67, 2
    %v237 = vrot.slane %v68, 2
    %v238 = vsel %vm228, %v236, %v237
    %241 = vrot.lane.b32.xlu0 %v238, 32
    %v242 = vpop.permute.xlu0 %241
    %v243 = vsel %vm74, %v242, %v238
    %244 = vrot.lane.b32.xlu0 %v237, 32
    %v245 = vpop.permute.xlu0 %244
    %v246 = vsel %vm74, %v245, %v237
    %247 = vrot.lane.b32.xlu0 %v243, 32
    %v248 = vpop.permute.xlu0 %247
    %249 = vrot.lane.b32.xlu0 %v246, 32
    %v250 = vpop.permute.xlu0 %249
    %v251 = vsel %vm74, %v248, %v238
    %v252 = vsel %vm74, %v250, %v237
    %v253 = vstv %s53
    %v254 = vmul.f32 %v253, %v251
    %v255 = vmul.f32 %v253, %v252
    %258 = vrot.lane.b32.xlu0 %v254, 127
    %v259 = vpop.permute.xlu0 %258
    %260 = vrot.lane.b32.xlu0 %v255, 127
    %v261 = vpop.permute.xlu0 %260
    %v264 = vadd.f32 %v234, %v259
    %v265 = vadd.f32 %v235, %v261
    %v266 = vstv %s54
    %v267 = vmul.f32 %v266, %v251
    %v268 = vmul.f32 %v266, %v252
    %271 = vrot.lane.b32.xlu0 %v267, 126
    %v272 = vpop.permute.xlu0 %271
    %273 = vrot.lane.b32.xlu0 %v268, 126
    %v274 = vpop.permute.xlu0 %273
    %v277 = vadd.f32 %v264, %v272
    %v278 = vadd.f32 %v265, %v274
    %v279 = vstv %s55
    %v280 = vmul.f32 %v279, %v251
    %v281 = vmul.f32 %v279, %v252
    %284 = vrot.lane.b32.xlu0 %v280, 125
    %v285 = vpop.permute.xlu0 %284
    %286 = vrot.lane.b32.xlu0 %v281, 125
    %v287 = vpop.permute.xlu0 %286
    %v290 = vadd.f32 %v277, %v285
    %v291 = vadd.f32 %v278, %v287
    %v292 = vstv %s56
    %v293 = vmul.f32 %v292, %v251
    %v294 = vmul.f32 %v292, %v252
    %297 = vrot.lane.b32.xlu0 %v293, 124
    %v298 = vpop.permute.xlu0 %297
    %299 = vrot.lane.b32.xlu0 %v294, 124
    %v300 = vpop.permute.xlu0 %299
    %v303 = vadd.f32 %v290, %v298
    %v304 = vadd.f32 %v291, %v300
    %v305 = vstv %s57
    %v306 = vmul.f32 %v305, %v67
    %v307 = vmul.f32 %v305, %v68
    %vm310 = vcmask 1044480
    %v311 = vrot.slane %v306, 3
    %v312 = vrot.slane %v307, 3
    %v313 = vsel %vm310, %v311, %v312
    %v316 = vadd.f32 %v303, %v313
    %v317 = vadd.f32 %v304, %v312
    %v318 = vrot.slane %v67, 3
    %v319 = vrot.slane %v68, 3
    %v320 = vsel %vm310, %v318, %v319
    %323 = vrot.lane.b32.xlu0 %v320, 32
    %v324 = vpop.permute.xlu0 %323
    %v325 = vsel %vm74, %v324, %v320
    %326 = vrot.lane.b32.xlu0 %v319, 32
    %v327 = vpop.permute.xlu0 %326
    %v328 = vsel %vm74, %v327, %v319
    %329 = vrot.lane.b32.xlu0 %v325, 32
    %v330 = vpop.permute.xlu0 %329
    %331 = vrot.lane.b32.xlu0 %v328, 32
    %v332 = vpop.permute.xlu0 %331
    %v333 = vsel %vm74, %v330, %v320
    %v334 = vsel %vm74, %v332, %v319
    %v335 = vstv %s58
    %v336 = vmul.f32 %v335, %v333
    %v337 = vmul.f32 %v335, %v334
    %340 = vrot.lane.b32.xlu0 %v336, 127
    %v341 = vpop.permute.xlu0 %340
    %342 = vrot.lane.b32.xlu0 %v337, 127
    %v343 = vpop.permute.xlu0 %342
    %v346 = vadd.f32 %v316, %v341
    %v347 = vadd.f32 %v317, %v343
    %v348 = vstv %s59
    %v349 = vmul.f32 %v348, %v333
    %v350 = vmul.f32 %v348, %v334
    %353 = vrot.lane.b32.xlu0 %v349, 126
    %v354 = vpop.permute.xlu0 %353
    %355 = vrot.lane.b32.xlu0 %v350, 126
    %v356 = vpop.permute.xlu0 %355
    %v359 = vadd.f32 %v346, %v354
    %v360 = vadd.f32 %v347, %v356
    %v361 = vstv %s60
    %v362 = vmul.f32 %v361, %v333
    %v363 = vmul.f32 %v361, %v334
    %366 = vrot.lane.b32.xlu0 %v362, 125
    %v367 = vpop.permute.xlu0 %366
    %368 = vrot.lane.b32.xlu0 %v363, 125
    %v369 = vpop.permute.xlu0 %368
    %v372 = vadd.f32 %v359, %v367
    %v373 = vadd.f32 %v360, %v369
    %v374 = vstv %s61
    %v375 = vmul.f32 %v374, %v333
    %v376 = vmul.f32 %v374, %v334
    %379 = vrot.lane.b32.xlu0 %v375, 124
    %v380 = vpop.permute.xlu0 %379
    %381 = vrot.lane.b32.xlu0 %v376, 124
    %v382 = vpop.permute.xlu0 %381
    %v385 = vadd.f32 %v372, %v380
    %v386 = vadd.f32 %v373, %v382
    %v387 = vstv %s62
    %v388 = vmul.f32 %v387, %v67
    %v389 = vmul.f32 %v387, %v68
    %vm392 = vcmask 1043456
    %v393 = vrot.slane %v388, 4
    %v394 = vrot.slane %v389, 4
    %v395 = vsel %vm392, %v393, %v394
    %v398 = vadd.f32 %v385, %v395
    %v399 = vadd.f32 %v386, %v394
    %v400 = vrot.slane %v67, 4
    %v401 = vrot.slane %v68, 4
    %v402 = vsel %vm392, %v400, %v401
    %405 = vrot.lane.b32.xlu0 %v402, 32
    %v406 = vpop.permute.xlu0 %405
    %v407 = vsel %vm74, %v406, %v402
    %408 = vrot.lane.b32.xlu0 %v401, 32
    %v409 = vpop.permute.xlu0 %408
    %v410 = vsel %vm74, %v409, %v401
    %411 = vrot.lane.b32.xlu0 %v407, 32
    %v412 = vpop.permute.xlu0 %411
    %413 = vrot.lane.b32.xlu0 %v410, 32
    %v414 = vpop.permute.xlu0 %413
    %v415 = vsel %vm74, %v412, %v402
    %v416 = vsel %vm74, %v414, %v401
    %v417 = vstv %s63
    %v418 = vmul.f32 %v417, %v415
    %v419 = vmul.f32 %v417, %v416
    %422 = vrot.lane.b32.xlu0 %v418, 127
    %v423 = vpop.permute.xlu0 %422
    %424 = vrot.lane.b32.xlu0 %v419, 127
    %v425 = vpop.permute.xlu0 %424
    %v428 = vadd.f32 %v398, %v423
    %v429 = vadd.f32 %v399, %v425
    %v430 = vstv %s64
    %v431 = vmul.f32 %v430, %v415
    %v432 = vmul.f32 %v430, %v416
    %435 = vrot.lane.b32.xlu0 %v431, 126
    %v436 = vpop.permute.xlu0 %435
    %437 = vrot.lane.b32.xlu0 %v432, 126
    %v438 = vpop.permute.xlu0 %437
    %v441 = vadd.f32 %v428, %v436
    %v442 = vadd.f32 %v429, %v438
    %v443 = vstv %s65
    %v444 = vmul.f32 %v443, %v415
    %v445 = vmul.f32 %v443, %v416
    %448 = vrot.lane.b32.xlu0 %v444, 125
    %v449 = vpop.permute.xlu0 %448
    %450 = vrot.lane.b32.xlu0 %v445, 125
    %v451 = vpop.permute.xlu0 %450
    %v454 = vadd.f32 %v441, %v449
    %v455 = vadd.f32 %v442, %v451
    %v456 = vstv %s66
    %v457 = vmul.f32 %v456, %v415
    %v458 = vmul.f32 %v456, %v416
    %461 = vrot.lane.b32.xlu0 %v457, 124
    %v462 = vpop.permute.xlu0 %461
    %463 = vrot.lane.b32.xlu0 %v458, 124
    %v464 = vpop.permute.xlu0 %463
    %v467 = vadd.f32 %v454, %v462
    %v468 = vadd.f32 %v455, %v464
    %s469 = sld [smem:[#allocation2]]
    %v470 = vstv %s469
    %v471 = vadd.f32 %v467, %v470
    %v472 = vadd.f32 %v468, %v470
    %vm473 = vcmask 261120
    %474 = vst.msk [vmem:[%s3] sm:$0xff] %vm473, %v471
    %vm475 = vcmask 257024
    %476 = vst.msk [vmem:[%s3 + $0x8] sm:$0xf] %vm475, %v472
    // Predicated region
    $region22: #{tpu_custom_call.1} parent=1 // pred_check
      _
    $region23: #{tpu_custom_call.1} parent=1 // pred_check_branch
      %478 = sbr.rel (0) target = $region25
    $region24: #{tpu_custom_call.1} parent=1 // pred_region
      _
    $region25: #{tpu_custom_call.1} parent=1 // pred_fallthru
      _
    // Predicated region
    $region26: #{tpu_custom_call.1} parent=1 // pred_check
      _
    $region27: #{tpu_custom_call.1} parent=1 // pred_check_branch
      %480 = sbr.rel (0) target = $region29
    $region28: #{tpu_custom_call.1} parent=1 // pred_region
      _
    $region29: #{tpu_custom_call.1} parent=1 // pred_fallthru
      _
    %481 = vsyncpa [#allocation4], 1
    %482 = vsyncpa [#allocation5], 1

</llo_original>
